<compile_context>
chip_gen: v6e
topology: v6e:2x2x1
jax: 0.10.0
libtpu: 0.0.40
codegen_flags: <defaults>
</compile_context>

<pallas_src>
import functools

import jax
import jax.numpy as jnp
from jax import lax
from jax.experimental import pallas as pl
from jax.experimental.pallas import tpu as pltpu


def _round_up(x, m):
    return ((x + m - 1) // m) * m


def _contrastive_loss_kernel(zi_ref, zj_diag_ref, zj_col_ref, loss_ref,
                             zi_n_ref, m_ref, l_ref, *,
                             inv_temperature, pad_cols):
    ki = pl.program_id(1)
    nk = pl.num_programs(1)

    # ---- once per row tile: normalize z_i rows, fold 1/T, stash in VMEM ----
    @pl.when(ki == 0)
    def _():
        zi = zi_ref[...].astype(jnp.float32)                       # (TQ, D)
        ss = jnp.sum(zi * zi, axis=-1, keepdims=True)
        # PyTorch: x / clamp_min(||x||, 1e-12) == x * rsqrt(clamp_min(||x||^2, 1e-24))
        zi_n = zi * (lax.rsqrt(jnp.maximum(ss, 1e-24)) * inv_temperature)
        zi_n_ref[...] = zi_n.astype(zi_n_ref.dtype)                # rows carry 1/T
        m_ref[...] = jnp.full(m_ref.shape, -jnp.inf, dtype=jnp.float32)
        l_ref[...] = jnp.zeros(l_ref.shape, dtype=jnp.float32)

    # ---- similarity tile on the MXU (NT contraction, no transpose) ---------
    # z_j columns arrive already L2-normalized (wrapper), in the matmul dtype.
    s = lax.dot_general(zi_n_ref[...], zj_col_ref[...],
                        dimension_numbers=(((1,), (1,)), ((), ())),
                        preferred_element_type=jnp.float32)        # (TQ, TK)

    # ---- online logsumexp ---------------------------------------------------
    m_prev = m_ref[...]
    m_new = jnp.maximum(m_prev, jnp.max(s, axis=-1, keepdims=True))
    alpha = jnp.exp(m_prev - m_new)
    l_ref[...] = alpha * l_ref[...] + jnp.sum(jnp.exp(s - m_new),
                                              axis=-1, keepdims=True)
    m_ref[...] = m_new

    # ---- finalize: per-row loss = logsumexp - sim[i, i] ---------------------
    @pl.when(ki == nk - 1)
    def _():
        m_f = m_ref[...]
        l_f = l_ref[...]
        if pad_cols:
            # Padded z_j rows are exactly zero after normalization, so every
            # padded column contributed exp(0 - m).  Remove them once here
            # instead of masking a full (TQ, TK) tile on every grid step.
            l_f = l_f - float(pad_cols) * jnp.exp(-m_f)
        zi_n = zi_n_ref[...].astype(jnp.float32)                   # carries 1/T
        zjd = zj_diag_ref[...].astype(jnp.float32)                 # normalized
        diag = jnp.sum(zi_n * zjd, axis=-1, keepdims=True)         # sim[i, i]
        loss_ref[...] = m_f + jnp.log(l_f) - diag


def _vmem_footprint(tq, tk, D, zi_bytes, mm_bytes):
    # Double-buffered input blocks + zi_n scratch (+ tiny m/l/out, ignored).
    return (2 * tq * D * zi_bytes       # z_i row blocks
            + 2 * tq * D * mm_bytes     # z_j diag blocks
            + 2 * tk * D * mm_bytes     # z_j column blocks
            + tq * D * mm_bytes)        # normalized z_i scratch


def _select_tiles(B, D, zi_bytes, mm_bytes, budget=40 * 1024 * 1024):
    # Small batch: one (bp, bp) tile if it fits the VMEM budget.
    if B <= 512:
        t = _round_up(B, 8)
        if _vmem_footprint(t, t, D, zi_bytes, mm_bytes) <= budget:
            return t, t, t
    # General path: large hardware-aligned tiles (big row tile cuts the z_j
    # re-stream, the v5e/v6e bottleneck); shrink under VMEM pressure (v7x).
    tq, tk = 512, 512
    while _vmem_footprint(tq, tk, D, zi_bytes, mm_bytes) > budget and tk > 128:
        tk //= 2
    while _vmem_footprint(tq, tk, D, zi_bytes, mm_bytes) > budget and tq > 128:
        tq //= 2
    bp = _round_up(B, max(tq, tk))
    return tq, tk, bp


def contrastive_loss(z_i, z_j, temperature=0.5, *, matmul_dtype=jnp.bfloat16):
    """z_i, z_j: (B, D). Returns scalar float32 loss.

    matmul_dtype=jnp.bfloat16 (default) gives full MXU throughput and halves the
    z_j HBM stream; pass jnp.float32 for bit-faithful f32 logits.
    """
    assert z_i.shape == z_j.shape and z_i.ndim == 2
    B, D = z_i.shape

    # Pre-normalize z_j once (O(B*D)); store in the matmul dtype.
    zj32 = z_j.astype(jnp.float32)
    zj_ss = jnp.sum(zj32 * zj32, axis=-1, keepdims=True)
    zj_n = (zj32 * lax.rsqrt(jnp.maximum(zj_ss, 1e-24))).astype(matmul_dtype)

    zi_bytes = jnp.dtype(z_i.dtype).itemsize
    mm_bytes = jnp.dtype(matmul_dtype).itemsize
    tq, tk, bp = _select_tiles(B, D, zi_bytes, mm_bytes)

    if bp != B:
        pad = bp - B
        zi_p = jnp.pad(z_i, ((0, pad), (0, 0)))
        zj_p = jnp.pad(zj_n, ((0, pad), (0, 0)))   # padded rows are exactly 0
    else:
        zi_p, zj_p = z_i, zj_n

    grid = (bp // tq, bp // tk)

    kernel = functools.partial(
        _contrastive_loss_kernel,
        inv_temperature=float(1.0 / temperature),
        pad_cols=int(bp - B),
    )

    footprint = _vmem_footprint(tq, tk, D, zi_bytes, mm_bytes)
    vmem_limit = int(min(64 * 1024 * 1024, max(32 * 1024 * 1024, 2 * footprint)))

    per_row = pl.pallas_call(
        kernel,
        out_shape=jax.ShapeDtypeStruct((bp, 1), jnp.float32),
        grid_spec=pltpu.PrefetchScalarGridSpec(
            num_scalar_prefetch=0,
            grid=grid,
            in_specs=[
                pl.BlockSpec((tq, D), lambda qi, ki: (qi, 0)),  # z_i rows (raw)
                pl.BlockSpec((tq, D), lambda qi, ki: (qi, 0)),  # z_j rows (diag, normed)
                pl.BlockSpec((tk, D), lambda qi, ki: (ki, 0)),  # z_j cols (normed)
            ],
            out_specs=pl.BlockSpec((tq, 1), lambda qi, ki: (qi, 0)),
            scratch_shapes=[
                pltpu.VMEM((tq, D), matmul_dtype),  # normalized z_i (carries 1/T)
                pltpu.VMEM((tq, 1), jnp.float32),   # running max m
                pltpu.VMEM((tq, 1), jnp.float32),   # running sum l
            ],
        ),
        compiler_params=pltpu.CompilerParams(
            dimension_semantics=("parallel", "arbitrary"),
            vmem_limit_bytes=vmem_limit),
    )(zi_p, zj_p, zj_p)

    # Tiny final reduction (mean over B scalars) stays in the wrapper so the
    # row-tile grid axis can be truly parallel (no cross-core scalar race).
    return jnp.mean(per_row[:B, 0])


def _reference_loss(z_i, z_j, temperature=0.5):
    zi = z_i / jnp.maximum(jnp.linalg.norm(z_i, axis=-1, keepdims=True), 1e-12)
    zj = z_j / jnp.maximum(jnp.linalg.norm(z_j, axis=-1, keepdims=True), 1e-12)
    sim = jnp.matmul(zi, zj.T, precision=lax.Precision.HIGHEST) / temperature
    labels = jnp.arange(z_i.shape[0])
    logprobs = jax.nn.log_softmax(sim, axis=-1)
    return -jnp.mean(logprobs[jnp.arange(z_i.shape[0]), labels])


if __name__ == "__main__":
    key = jax.random.PRNGKey(0)
    k1, k2, k3, k4 = jax.random.split(key, 4)

    # Small demo shape consistent with the module (batch of embedding pairs).
    B, D = 8, 32
    z_i = jax.random.normal(k1, (B, D), dtype=jnp.float32)
    z_j = jax.random.normal(k2, (B, D), dtype=jnp.float32)

    ref = _reference_loss(z_i, z_j, temperature=0.5)

    # Exact-ish f32 path.
    loss_f32 = contrastive_loss(z_i, z_j, temperature=0.5,
                                matmul_dtype=jnp.float32)
    jax.block_until_ready(loss_f32)
    assert jnp.allclose(loss_f32, ref, atol=1e-4, rtol=1e-4), (loss_f32, ref)

    # Default bf16-operand path (f32 accumulation) — loose tolerance.
    loss_bf16 = contrastive_loss(z_i, z_j, temperature=0.5)
    jax.block_until_ready(loss_bf16)
    assert jnp.allclose(loss_bf16, ref, atol=5e-2, rtol=5e-2), (loss_bf16, ref)

    # Exercise the multi-tile grid + padded-column correction path.
    B2, D2 = 600, 64
    z_i2 = jax.random.normal(k3, (B2, D2), dtype=jnp.float32)
    z_j2 = jax.random.normal(k4, (B2, D2), dtype=jnp.float32)
    loss2 = contrastive_loss(z_i2, z_j2, temperature=0.5,
                             matmul_dtype=jnp.float32)
    jax.block_until_ready(loss2)
    ref2 = _reference_loss(z_i2, z_j2, temperature=0.5)
    assert jnp.allclose(loss2, ref2, atol=1e-4, rtol=1e-4), (loss2, ref2)

    print("KERNEL_OK")
</pallas_src>

<mosaic_0001>
module attributes {stable_mosaic.version = 11 : i64} {
  func.func @_contrastive_loss_kernel(%arg0: i32, %arg1: i32, %arg2: memref<8x32xf32, #tpu.memory_space<vmem>>, %arg3: memref<8x32xf32, #tpu.memory_space<vmem>>, %arg4: memref<8x32xf32, #tpu.memory_space<vmem>>, %arg5: memref<8x1xf32, #tpu.memory_space<vmem>>, %arg6: memref<8x32xf32, #tpu.memory_space<vmem>>, %arg7: memref<8x1xf32, #tpu.memory_space<vmem>>, %arg8: memref<8x1xf32, #tpu.memory_space<vmem>>) attributes {dimension_semantics = [#tpu.dimension_semantics<parallel>, #tpu.dimension_semantics<arbitrary>], iteration_bounds = array<i64: 1, 1>, scalar_prefetch = 0 : i64, scratch_operands = 3 : i64, tpu.core_type = #tpu.core_type<tc>, window_params = [{transform_indices = @transform_0, window_bounds = array<i64: 8, 32>}, {transform_indices = @transform_1, window_bounds = array<i64: 8, 32>}, {transform_indices = @transform_2, window_bounds = array<i64: 8, 32>}, {transform_indices = @transform_3, window_bounds = array<i64: 8, 1>}]} {
    %c0_i32 = arith.constant 0 : i32
    %0 = arith.cmpi eq, %arg1, %c0_i32 : i32
    %1 = arith.extui %0 : i1 to i32
    %c0_i32_0 = arith.constant 0 : i32
    %2 = arith.cmpi ne, %1, %c0_i32_0 : i32
    scf.if %2 {
      %c0_16 = arith.constant 0 : index
      %c0_17 = arith.constant 0 : index
      %25 = vector.load %arg2[%c0_16, %c0_17] : memref<8x32xf32, #tpu.memory_space<vmem>>, vector<8x32xf32>
      %26 = arith.mulf %25, %25 : vector<8x32xf32>
      %cst_18 = arith.constant dense<0.000000e+00> : vector<8xf32>
      %27 = vector.multi_reduction <add>, %26, %cst_18 [1] : vector<8x32xf32> to vector<8xf32>
      %28 = vector.shape_cast %27 : vector<8xf32> to vector<8x1xf32>
      %cst_19 = arith.constant 1.000000e-24 : f32
      %29 = vector.broadcast %cst_19 : f32 to vector<8x1xf32>
      %30 = arith.maximumf %28, %29 : vector<8x1xf32>
      %31 = math.rsqrt %30 : vector<8x1xf32>
      %cst_20 = arith.constant 2.000000e+00 : f32
      %32 = vector.broadcast %cst_20 : f32 to vector<8x1xf32>
      %33 = arith.mulf %31, %32 : vector<8x1xf32>
      %34 = vector.broadcast %33 : vector<8x1xf32> to vector<8x32xf32>
      %35 = arith.mulf %25, %34 : vector<8x32xf32>
      %c0_21 = arith.constant 0 : index
      %c0_22 = arith.constant 0 : index
      %36 = vector.load %arg6[%c0_21, %c0_22] : memref<8x32xf32, #tpu.memory_space<vmem>>, vector<8x32xf32>
      tpu.vector_store %arg6[%c0_21, %c0_22], %35 {strides = array<i32>} : memref<8x32xf32, #tpu.memory_space<vmem>>, vector<8x32xf32>,
      %cst_23 = arith.constant 0xFF800000 : f32
      %37 = vector.broadcast %cst_23 : f32 to vector<8x1xf32>
      %c0_24 = arith.constant 0 : index
      %c0_25 = arith.constant 0 : index
      %38 = vector.load %arg7[%c0_24, %c0_25] : memref<8x1xf32, #tpu.memory_space<vmem>>, vector<8x1xf32>
      tpu.vector_store %arg7[%c0_24, %c0_25], %37 {strides = array<i32>} : memref<8x1xf32, #tpu.memory_space<vmem>>, vector<8x1xf32>,
      %cst_26 = arith.constant 0.000000e+00 : f32
      %39 = vector.broadcast %cst_26 : f32 to vector<8x1xf32>
      %c0_27 = arith.constant 0 : index
      %c0_28 = arith.constant 0 : index
      %40 = vector.load %arg8[%c0_27, %c0_28] : memref<8x1xf32, #tpu.memory_space<vmem>>, vector<8x1xf32>
      tpu.vector_store %arg8[%c0_27, %c0_28], %39 {strides = array<i32>} : memref<8x1xf32, #tpu.memory_space<vmem>>, vector<8x1xf32>,
    } else {
    }
    %c0 = arith.constant 0 : index
    %c0_1 = arith.constant 0 : index
    %3 = vector.load %arg6[%c0, %c0_1] : memref<8x32xf32, #tpu.memory_space<vmem>>, vector<8x32xf32>
    %c0_2 = arith.constant 0 : index
    %c0_3 = arith.constant 0 : index
    %4 = vector.load %arg4[%c0_2, %c0_3] : memref<8x32xf32, #tpu.memory_space<vmem>>, vector<8x32xf32>
    %cst = arith.constant dense<0.000000e+00> : vector<8x8xf32>
    %5 = tpu.matmul %3, %4, %cst {dimension_numbers = #tpu.dot_dimension_numbers<[1], [1], [0], [0], [0, 0, 1, 0], [], []>} : vector<8x32xf32>, vector<8x32xf32>, vector<8x8xf32> -> vector<8x8xf32>
    %c0_4 = arith.constant 0 : index
    %c0_5 = arith.constant 0 : index
    %6 = vector.load %arg7[%c0_4, %c0_5] : memref<8x1xf32, #tpu.memory_space<vmem>>, vector<8x1xf32>
    %cst_6 = arith.constant dense<0xFF800000> : vector<8xf32>
    %7 = vector.multi_reduction <maximumf>, %5, %cst_6 [1] : vector<8x8xf32> to vector<8xf32>
    %8 = vector.shape_cast %7 : vector<8xf32> to vector<8x1xf32>
    %9 = arith.maximumf %6, %8 : vector<8x1xf32>
    %10 = arith.subf %6, %9 : vector<8x1xf32>
    %11 = math.exp %10 : vector<8x1xf32>
    %c0_7 = arith.constant 0 : index
    %c0_8 = arith.constant 0 : index
    %12 = vector.load %arg8[%c0_7, %c0_8] : memref<8x1xf32, #tpu.memory_space<vmem>>, vector<8x1xf32>
    %13 = arith.mulf %11, %12 : vector<8x1xf32>
    %14 = vector.broadcast %9 : vector<8x1xf32> to vector<8x8xf32>
    %15 = arith.subf %5, %14 : vector<8x8xf32>
    %16 = math.exp %15 : vector<8x8xf32>
    %cst_9 = arith.constant dense<0.000000e+00> : vector<8xf32>
    %17 = vector.multi_reduction <add>, %16, %cst_9 [1] : vector<8x8xf32> to vector<8xf32>
    %18 = vector.shape_cast %17 : vector<8xf32> to vector<8x1xf32>
    %19 = arith.addf %13, %18 : vector<8x1xf32>
    %c0_10 = arith.constant 0 : index
    %c0_11 = arith.constant 0 : index
    %20 = vector.load %arg8[%c0_10, %c0_11] : memref<8x1xf32, #tpu.memory_space<vmem>>, vector<8x1xf32>
    tpu.vector_store %arg8[%c0_10, %c0_11], %19 {strides = array<i32>} : memref<8x1xf32, #tpu.memory_space<vmem>>, vector<8x1xf32>,
    %c0_12 = arith.constant 0 : index
    %c0_13 = arith.constant 0 : index
    %21 = vector.load %arg7[%c0_12, %c0_13] : memref<8x1xf32, #tpu.memory_space<vmem>>, vector<8x1xf32>
    tpu.vector_store %arg7[%c0_12, %c0_13], %9 {strides = array<i32>} : memref<8x1xf32, #tpu.memory_space<vmem>>, vector<8x1xf32>,
    %c0_i32_14 = arith.constant 0 : i32
    %22 = arith.cmpi eq, %arg1, %c0_i32_14 : i32
    %23 = arith.extui %22 : i1 to i32
    %c0_i32_15 = arith.constant 0 : i32
    %24 = arith.cmpi ne, %23, %c0_i32_15 : i32
    scf.if %24 {
      %c0_16 = arith.constant 0 : index
      %c0_17 = arith.constant 0 : index
      %25 = vector.load %arg7[%c0_16, %c0_17] : memref<8x1xf32, #tpu.memory_space<vmem>>, vector<8x1xf32>
      %c0_18 = arith.constant 0 : index
      %c0_19 = arith.constant 0 : index
      %26 = vector.load %arg8[%c0_18, %c0_19] : memref<8x1xf32, #tpu.memory_space<vmem>>, vector<8x1xf32>
      %c0_20 = arith.constant 0 : index
      %c0_21 = arith.constant 0 : index
      %27 = vector.load %arg6[%c0_20, %c0_21] : memref<8x32xf32, #tpu.memory_space<vmem>>, vector<8x32xf32>
      %c0_22 = arith.constant 0 : index
      %c0_23 = arith.constant 0 : index
      %28 = vector.load %arg3[%c0_22, %c0_23] : memref<8x32xf32, #tpu.memory_space<vmem>>, vector<8x32xf32>
      %29 = arith.mulf %27, %28 : vector<8x32xf32>
      %cst_24 = arith.constant dense<0.000000e+00> : vector<8xf32>
      %30 = vector.multi_reduction <add>, %29, %cst_24 [1] : vector<8x32xf32> to vector<8xf32>
      %31 = vector.shape_cast %30 : vector<8xf32> to vector<8x1xf32>
      %32 = math.log %26 : vector<8x1xf32>
      %33 = arith.addf %25, %32 : vector<8x1xf32>
      %34 = arith.subf %33, %31 : vector<8x1xf32>
      %c0_25 = arith.constant 0 : index
      %c0_26 = arith.constant 0 : index
      %35 = vector.load %arg5[%c0_25, %c0_26] : memref<8x1xf32, #tpu.memory_space<vmem>>, vector<8x1xf32>
      tpu.vector_store %arg5[%c0_25, %c0_26], %34 {strides = array<i32>} : memref<8x1xf32, #tpu.memory_space<vmem>>, vector<8x1xf32>,
    } else {
    }
    return
  }
  func.func @transform_0(%arg0: i32, %arg1: i32) -> (i32, i32) {
    %c0_i32 = arith.constant 0 : i32
    %c0_i32_0 = arith.constant 0 : i32
    return %arg0, %c0_i32 : i32, i32
  }
  func.func @transform_1(%arg0: i32, %arg1: i32) -> (i32, i32) {
    %c0_i32 = arith.constant 0 : i32
    %c0_i32_0 = arith.constant 0 : i32
    return %arg0, %c0_i32 : i32, i32
  }
  func.func @transform_2(%arg0: i32, %arg1: i32) -> (i32, i32) {
    %c0_i32 = arith.constant 0 : i32
    %c0_i32_0 = arith.constant 0 : i32
    return %arg1, %c0_i32 : i32, i32
  }
  func.func @transform_3(%arg0: i32, %arg1: i32) -> (i32, i32) {
    %c0_i32 = arith.constant 0 : i32
    %c0_i32_0 = arith.constant 0 : i32
    return %arg0, %c0_i32 : i32, i32
  }
}

</mosaic_0001>

<llo_original>
// kernel: tpu_custom_call.1
$region0: #{tpu_custom_call.1}
  #allocation0 [shape = 'u32[]', space=smem, size = 0x4, offset = 0x4, fixed_abs, tag = 'smem constant byte address 0x4 - core index']
  #allocation1 [shape = 'u32[144,128]{1,0:T(1,128)}', space=vmem, size = 0x12000, scoped, tag = 'internal scratch']
  #allocation2 [shape = 'f32[8,32]{1,0:T(8,128)}', space=vmem, size = 0x1000, scoped, tag = 'scratch operand']
  #allocation3 [shape = 'f32[8,1]{1,0:T(8,128)}', space=vmem, size = 0x1000, scoped, tag = 'scratch operand']
  #allocation4 [shape = 'f32[8,1]{1,0:T(8,128)}', space=vmem, size = 0x1000, scoped, tag = 'scratch operand']
  %s0 = inlined_call_operand.hbm [shape: f32[8,32], index: 0, kind: input, shape index: {}]
  %s1 = inlined_call_operand.hbm [shape: f32[8,32], index: 1, kind: input, shape index: {}]
  %s2 = inlined_call_operand.hbm [shape: f32[8,32], index: 2, kind: input, shape index: {}]
  %s3 = inlined_call_operand.vmem [shape: f32[8,1], index: 3, kind: output, shape index: {}]
  %s4 = sld [smem:[#allocation0]]
  $region42: #{tpu_custom_call.1} parent=0
    _
  %s6 = ssub.s32 1, %s4
  %s7 = scalar_select 0, %s6, %s4
  $region1: #{tpu_custom_call.1} parent=0
    #allocation5 [shape = 'u8[4096]{0}', space=vmem, size = 0x1000, scoped, tag = 'input window, operand 0, single buffered']
    #allocation6 [shape = 's32[1]{0}', space=sflag, size = 0x4, scoped, tag = 'scoped memory for tpu_custom_call.1']
    #allocation7 [shape = 'u8[4096]{0}', space=vmem, size = 0x1000, scoped, tag = 'input window, operand 1, single buffered']
    #allocation8 [shape = 's32[1]{0}', space=sflag, size = 0x4, scoped, tag = 'scoped memory for tpu_custom_call.1']
    #allocation9 [shape = 'u8[4096]{0}', space=vmem, size = 0x1000, scoped, tag = 'input window, operand 2, single buffered']
    %8 = vsyncpa [#allocation6], 0
    %9 = vsyncpa [#allocation8], 0
    // Predicated region
    $region2: #{tpu_custom_call.1} parent=1 // pred_check
      _
    $region3: #{tpu_custom_call.1} parent=1 // pred_check_branch
      %11 = sbr.rel (0) target = $region5
    $region4: #{tpu_custom_call.1} parent=1 // pred_region
      %s13 = ssub.s32 128, 128
      %14 = vsyncadd [#allocation6], %s13
      %s16 = sshll.u32 [#allocation5], 4
      %s17 = int_to_ptr.vmem [resolvable:$true] %s16
      %19 = dma.hbm_to_vmem [thread:$0]  %s0, 128, %s17, [#allocation6]
    $region5: #{tpu_custom_call.1} parent=1 // pred_fallthru
      _
    // Predicated region
    $region6: #{tpu_custom_call.1} parent=1 // pred_check
      _
    $region7: #{tpu_custom_call.1} parent=1 // pred_check_branch
      %21 = sbr.rel (0) target = $region9
    $region8: #{tpu_custom_call.1} parent=1 // pred_region
      %s23 = ssub.s32 128, 128
      %24 = vsyncadd [#allocation8], %s23
      %s26 = sshll.u32 [#allocation7], 4
      %s27 = int_to_ptr.vmem [resolvable:$true] %s26
      %29 = dma.hbm_to_vmem [thread:$0]  %s1, 128, %s27, [#allocation8]
    $region9: #{tpu_custom_call.1} parent=1 // pred_fallthru
      _
    // Predicated region
    $region10: #{tpu_custom_call.1} parent=1 // pred_check
      _
    $region11: #{tpu_custom_call.1} parent=1 // pred_check_branch
      %31 = sbr.rel (0) target = $region13
    $region12: #{tpu_custom_call.1} parent=1 // pred_region
      %s33 = ssub.s32 128, 128
      %34 = vsyncadd [#allocation8], %s33
      %s36 = sshll.u32 [#allocation9], 4
      %s37 = int_to_ptr.vmem [resolvable:$true] %s36
      %39 = dma.hbm_to_vmem [thread:$0]  %s2, 128, %s37, [#allocation8]
    $region13: #{tpu_custom_call.1} parent=1 // pred_fallthru
      _
    // Predicated region
    $region14: #{tpu_custom_call.1} parent=1 // pred_check
      _
    $region15: #{tpu_custom_call.1} parent=1 // pred_check_branch
      %41 = sbr.rel (0) target = $region17
    $region16: #{tpu_custom_call.1} parent=1 // pred_region
      %42 = dma.done [#allocation6], 128
    $region17: #{tpu_custom_call.1} parent=1 // pred_fallthru
      _
    // Predicated region
    $region18: #{tpu_custom_call.1} parent=1 // pred_check
      _
    $region19: #{tpu_custom_call.1} parent=1 // pred_check_branch
      %44 = sbr.rel (0) target = $region21
    $region20: #{tpu_custom_call.1} parent=1 // pred_region
      %45 = dma.done [#allocation8], 128
    $region21: #{tpu_custom_call.1} parent=1 // pred_fallthru
      _
    // Predicated region
    $region22: #{tpu_custom_call.1} parent=1 // pred_check
      _
    $region23: #{tpu_custom_call.1} parent=1 // pred_check_branch
      %47 = sbr.rel (0) target = $region25
    $region24: #{tpu_custom_call.1} parent=1 // pred_region
      %48 = dma.done [#allocation8], 128
    $region25: #{tpu_custom_call.1} parent=1 // pred_fallthru
      _
    %p49 = scmp.eq.s32.totalorder 0, 0
    // Predicated region
    $region26: #{tpu_custom_call.1} parent=1 // pred_check
      %p50 = pneg %p49
    $region27: #{tpu_custom_call.1} parent=1 // pred_check_branch
      %52 = sbr.rel (%p50) target = $region29
    $region28: #{tpu_custom_call.1} parent=1 // pred_region
      %v53 = vld [vmem:[#allocation5] sm:$0xff]
      %v54 = vmul.f32 %v53, %v53
      %vm55 = vcmask 261120
      %v56 = vsel %vm55, %v54, 0.0
      %57 = vadd.xlane.f32.xlu0 %v56
      %v58 = vpop.xlane.xlu0 %57
      %v59 = vmax.f32 %v58, 1e-24
      %v60 = vrsqrt.pop %v59
      %v61 = vmul.f32 %v60, 2.0
      %v62 = vmul.f32 %v53, %v61
      %63 = vst.msk [vmem:[#allocation2] sm:$0xff] %vm55, %v62
      %vm64 = vcmask 7168
      %65 = vst.msk [vmem:[#allocation3] sm:$0xff] %vm64, -inf
      %66 = vst.msk [vmem:[#allocation4] sm:$0xff] %vm64, 0.0
    $region29: #{tpu_custom_call.1} parent=1 // pred_fallthru
      _
    %v67 = vld [vmem:[#allocation2] sm:$0xff]
    %v68 = vld [vmem:[#allocation9] sm:$0xff]
    %vm69 = vcmask 261120
    %v71 = vsel %vm69, %v67, 0
    %v74 = vsel %vm69, %v68, 0
    %76 = vmatprep.subr.mxu0 0.0
    %77 = vmatpush1.xpose.msra.mxu0 0.0
    %78 = vmatprep.subr.mxu0 0.0
    %79 = vmatpush1.xpose.msra.mxu0 0.0
    %80 = vmatprep.subr.mxu0 0.0
    %81 = vmatpush1.xpose.msra.mxu0 0.0
    %82 = vmatprep.subr.mxu0 0.0
    %83 = vmatpush1.xpose.msra.mxu0 0.0
    %84 = vmatprep.subr.mxu0 0.0
    %85 = vmatpush1.xpose.msra.mxu0 0.0
    %86 = vmatprep.subr.mxu0 0.0
    %87 = vmatpush1.xpose.msra.mxu0 0.0
    %88 = vmatprep.subr.mxu0 0.0
    %89 = vmatpush1.xpose.msra.mxu0 0.0
    %90 = vmatprep.subr.mxu0 0.0
    %91 = vmatpush1.xpose.msra.mxu0 0.0
    %92 = vmatprep.subr.mxu0 0.0
    %93 = vmatpush1.xpose.msra.mxu0 0.0
    %94 = vmatprep.subr.mxu0 0.0
    %95 = vmatpush1.xpose.msra.mxu0 0.0
    %96 = vmatprep.subr.mxu0 0.0
    %97 = vmatpush1.xpose.msra.mxu0 0.0
    %98 = vmatprep.subr.mxu0 0.0
    %99 = vmatpush1.xpose.msra.mxu0 0.0
    %100 = vmatprep.subr.mxu0 0.0
    %101 = vmatpush1.xpose.msra.mxu0 0.0
    %102 = vmatprep.subr.mxu0 0.0
    %103 = vmatpush1.xpose.msra.mxu0 0.0
    %104 = vmatprep.subr.mxu0 0.0
    %105 = vmatpush1.xpose.msra.mxu0 0.0
    %106 = vmatprep.subr.mxu0 0.0
    %107 = vmatpush1.xpose.msra.mxu0 %v74
    %108 = vmatprep.subr.mxu0 0.0
    %109 = vmatpush2.xpose.msra.mxu0 0.0
    %110 = vmatprep.subr.mxu0 0.0
    %111 = vmatpush2.xpose.msra.mxu0 0.0
    %112 = vmatprep.subr.mxu0 0.0
    %113 = vmatpush2.xpose.msra.mxu0 0.0
    %114 = vmatprep.subr.mxu0 0.0
    %115 = vmatpush2.xpose.msra.mxu0 0.0
    %116 = vmatprep.subr.mxu0 0.0
    %117 = vmatpush2.xpose.msra.mxu0 0.0
    %118 = vmatprep.subr.mxu0 0.0
    %119 = vmatpush2.xpose.msra.mxu0 0.0
    %120 = vmatprep.subr.mxu0 0.0
    %121 = vmatpush2.xpose.msra.mxu0 0.0
    %122 = vmatprep.subr.mxu0 0.0
    %123 = vmatpush2.xpose.msra.mxu0 0.0
    %124 = vmatprep.subr.mxu0 0.0
    %125 = vmatpush2.xpose.msra.mxu0 0.0
    %126 = vmatprep.subr.mxu0 0.0
    %127 = vmatpush2.xpose.msra.mxu0 0.0
    %128 = vmatprep.subr.mxu0 0.0
    %129 = vmatpush2.xpose.msra.mxu0 0.0
    %130 = vmatprep.subr.mxu0 0.0
    %131 = vmatpush2.xpose.msra.mxu0 0.0
    %132 = vmatprep.subr.mxu0 0.0
    %133 = vmatpush2.xpose.msra.mxu0 0.0
    %134 = vmatprep.subr.mxu0 0.0
    %135 = vmatpush2.xpose.msra.mxu0 0.0
    %136 = vmatprep.subr.mxu0 0.0
    %137 = vmatpush2.xpose.msra.mxu0 0.0
    %138 = vmatprep.subr.mxu0 0.0
    %139 = vmatpush2.xpose.msra.mxu0 0.0
    %140 = vmatprep.mubr.f32.mxu0 0.0
    %141 = vmatmul.mubr.f32.gmra.mxu0 %v71
    %v142 = vpop.f32.mrf.mxu0
    %v143 = vadd.f32 0.0, %v142
    %v144 = vpop.f32.mrf.mxu0
    %145 = vdwg.mxu0
    %v146 = vld [vmem:[#allocation3] sm:$0xff]
    %vm147 = vcmask 64512
    %v148 = vsel %vm147, %v143, -inf
    %149 = vmax.xlane.f32.xlu0 %v148
    %v150 = vpop.xlane.xlu0 %149
    %v151 = vmax.f32 %v146, %v150
    %v152 = vsub.f32 %v146, %v151
    %v153 = vmul.f32 %v152, 1.442695
    %v154 = vpow.pop %v153
    %v155 = vld [vmem:[#allocation4] sm:$0xff]
    %v156 = vmul.f32 %v154, %v155
    %158 = vset.pattern.permute.xlu0 0
    %159 = vperm.xlu0 %158, %v151
    %v160 = vpop.permute.xlu0 %159
    %v162 = vsub.f32 %v143, %v160
    %v163 = vmul.f32 %v162, 1.442695
    %v164 = vpow.pop %v163
    %v165 = vsel %vm147, %v164, 0.0
    %166 = vadd.xlane.f32.xlu0 %v165
    %v167 = vpop.xlane.xlu0 %166
    %v168 = vadd.f32 %v156, %v167
    %vm169 = vcmask 7168
    %170 = vst.msk [vmem:[#allocation4] sm:$0xff] %vm169, %v168
    %171 = vst.msk [vmem:[#allocation3] sm:$0xff] %vm169, %v151
    // Predicated region
    $region30: #{tpu_custom_call.1} parent=1 // pred_check
      %p172 = pneg %p49
    $region31: #{tpu_custom_call.1} parent=1 // pred_check_branch
      %174 = sbr.rel (%p172) target = $region33
    $region32: #{tpu_custom_call.1} parent=1 // pred_region
      %v175 = vld [vmem:[#allocation3] sm:$0xff]
      %v176 = vld [vmem:[#allocation4] sm:$0xff]
      %v177 = vld [vmem:[#allocation2] sm:$0xff]
      %v178 = vld [vmem:[#allocation7] sm:$0xff]
      %v179 = vmul.f32 %v177, %v178
      %v180 = vsel %vm69, %v179, 0.0
      %181 = vadd.xlane.f32.xlu0 %v180
      %v182 = vpop.xlane.xlu0 %181
      %v183 = vlog2.pop %v176
      %v184 = vmul.f32 %v183, 0.6931472
      %v185 = vadd.f32 %v175, %v184
      %v186 = vsub.f32 %v185, %v182
      %187 = vst.msk [vmem:[%s3] sm:$0xff] %vm169, %v186
    $region33: #{tpu_custom_call.1} parent=1 // pred_fallthru
      _
    // Predicated region
    $region34: #{tpu_custom_call.1} parent=1 // pred_check
      _
    $region35: #{tpu_custom_call.1} parent=1 // pred_check_branch
      %189 = sbr.rel (0) target = $region37
    $region36: #{tpu_custom_call.1} parent=1 // pred_region
      _
    $region37: #{tpu_custom_call.1} parent=1 // pred_fallthru
      _
    // Predicated region
    $region38: #{tpu_custom_call.1} parent=1 // pred_check
      _
    $region39: #{tpu_custom_call.1} parent=1 // pred_check_branch
      %191 = sbr.rel (0) target = $region41
    $region40: #{tpu_custom_call.1} parent=1 // pred_region
      _
    $region41: #{tpu_custom_call.1} parent=1 // pred_fallthru
      _
    %192 = vsyncpa [#allocation6], 1
    %193 = vsyncpa [#allocation8], 1

</llo_original>
